<compile_context>
chip_gen: v6e
topology: v6e:2x2x1
jax: 0.10.0
libtpu: 0.0.40
codegen_flags: <defaults>
</compile_context>

<pallas_src>
import jax
import jax.numpy as jnp
from jax.experimental import pallas as pl
from jax.experimental.pallas import tpu as pltpu

# Module-level constants implied by the PyTorch code (chosen small & consistent).
TRANSFORMER_EMBED_DIM = 64
NUM_CLASSES = 8
STATIC_INPUT_DIM = 16

HID_STATIC = 32   # fc_static output
HID1 = 64         # fc1 output
HID2 = 32         # fc2 output


def _dqn_kernel(ts_ref, st_ref,
                ws_ref, bs_ref,
                w1t_ref, w1s_ref, b1_ref,
                w2_ref, b2_ref,
                wo_ref, bo_ref,
                out_ref):
    # Inputs arrive as f32 straight from the caller; cast to bf16 in-kernel
    # (free VPU work under the DMA) so the wrapper never touches HBM.
    ts = ts_ref[...].astype(jnp.bfloat16)
    st = st_ref[...].astype(jnp.bfloat16)

    # fc_static: Linear(static_input_dim, 32) + ReLU  (Dropout = identity).
    # f32 bias add; cast to bf16 *before* ReLU (identical values, smaller regs).
    s = jnp.dot(st, ws_ref[...], preferred_element_type=jnp.float32) + bs_ref[...]
    s = jnp.maximum(s.astype(jnp.bfloat16), 0.0)

    # fc1 on cat(transformer_state, static_out): Linear(E + 32, 64) + ReLU.
    # Split-weight form avoids an in-kernel concat; both dots accumulate f32.
    h1 = (jnp.dot(ts, w1t_ref[...], preferred_element_type=jnp.float32)
          + jnp.dot(s, w1s_ref[...], preferred_element_type=jnp.float32)
          + b1_ref[...])
    h1 = jnp.maximum(h1.astype(jnp.bfloat16), 0.0)

    # fc2: Linear(64, 32) + ReLU.
    h2 = jnp.dot(h1, w2_ref[...], preferred_element_type=jnp.float32) + b2_ref[...]
    h2 = jnp.maximum(h2.astype(jnp.bfloat16), 0.0)

    # out: Linear(32, NUM_CLASSES).  Narrow (8-lane) f32 store kept on purpose:
    # padding to 128 lanes would blow up HBM writeback for a mem-bound kernel.
    q = jnp.dot(h2, wo_ref[...], preferred_element_type=jnp.float32) + bo_ref[...]
    out_ref[...] = q.astype(out_ref.dtype)


def dqn_agent_forward(transformer_state, static_features, params, *, block_b=2048):
    """Run the DQNAgent forward pass as one batch-tiled Pallas kernel.

    transformer_state: [B, TRANSFORMER_EMBED_DIM] f32
    static_features:   [B, STATIC_INPUT_DIM] f32
    Returns q_values:  [B, NUM_CLASSES] f32

    block_b is the batch-tile size; sweep 1024/2048/4096 per generation.
    """
    B = transformer_state.shape[0]
    if B <= block_b:
        # Single block; a block dim equal to the full array dim is always legal.
        TB = B
    else:
        # Tiled: keep the sublane dim a multiple of 8; Pallas masks the edge block.
        TB = max(8, (block_b // 8) * 8)
    grid = (pl.cdiv(B, TB),)

    args = (
        transformer_state, static_features,
        params["w_static"], params["b_static"],
        params["w1_t"], params["w1_s"], params["b1"],
        params["w2"], params["b2"],
        params["w_out"], params["b_out"],
    )

    def resident(x):
        # Same block index every grid step -> DMA'd once, resident in VMEM.
        return pl.BlockSpec(x.shape, lambda i: (0,) * x.ndim)

    in_specs = [
        pl.BlockSpec((TB, TRANSFORMER_EMBED_DIM), lambda i: (i, 0)),
        pl.BlockSpec((TB, STATIC_INPUT_DIM), lambda i: (i, 0)),
    ] + [resident(a) for a in args[2:]]
    out_specs = pl.BlockSpec((TB, NUM_CLASSES), lambda i: (i, 0))

    # Advisory cost estimate (mem-bound, trivial FLOPs).
    flops = 2 * B * (STATIC_INPUT_DIM * HID_STATIC
                     + (TRANSFORMER_EMBED_DIM + HID_STATIC) * HID1
                     + HID1 * HID2
                     + HID2 * NUM_CLASSES)
    weight_bytes = sum(int(a.size) * a.dtype.itemsize for a in args[2:])
    bytes_accessed = (B * (TRANSFORMER_EMBED_DIM + STATIC_INPUT_DIM) * 4   # f32 in
                      + B * NUM_CLASSES * 4                               # f32 out
                      + weight_bytes)

    return pl.pallas_call(
        _dqn_kernel,
        out_shape=jax.ShapeDtypeStruct((B, NUM_CLASSES), jnp.float32),
        grid=grid,
        in_specs=in_specs,
        out_specs=out_specs,
        compiler_params=pltpu.CompilerParams(
            # v7x: shard batch tiles across both TensorCores; no-op on v5e/v6e.
            dimension_semantics=("parallel",)),
        cost_estimate=pl.CostEstimate(
            flops=flops, transcendentals=0, bytes_accessed=bytes_accessed),
    )(*args)


def init_params(key):
    """Deterministic init mimicking PyTorch Linear's U(-1/sqrt(fan_in), +1/sqrt(fan_in)).
    Weights stored pre-transposed as [in_features, out_features], cast to bf16
    (MXU-native operands); biases stay f32 (added to the f32 accumulators)."""
    def linear(k, fan_in, fan_out):
        kw, kb = jax.random.split(k)
        bound = 1.0 / jnp.sqrt(jnp.float32(fan_in))
        w = jax.random.uniform(kw, (fan_in, fan_out), jnp.float32, -bound, bound)
        b = jax.random.uniform(kb, (1, fan_out), jnp.float32, -bound, bound)
        return w, b

    k0, k1, k2, k3 = jax.random.split(key, 4)
    w_s, b_s = linear(k0, STATIC_INPUT_DIM, HID_STATIC)
    w1, b1 = linear(k1, TRANSFORMER_EMBED_DIM + HID_STATIC, HID1)
    w2, b2 = linear(k2, HID1, HID2)
    wo, bo = linear(k3, HID2, NUM_CLASSES)

    bf = lambda w: w.astype(jnp.bfloat16)
    return {
        "w_static": bf(w_s), "b_static": b_s,
        "w1_t": bf(w1[:TRANSFORMER_EMBED_DIM, :]),   # transformer slice of fc1 weight
        "w1_s": bf(w1[TRANSFORMER_EMBED_DIM:, :]),   # static-out slice of fc1 weight
        "b1": b1,
        "w2": bf(w2), "b2": b2,
        "w_out": bf(wo), "b_out": bo,
    }


def reference_forward(transformer_state, static_features, p):
    """Pure-JAX reference with the same bf16 rounding / f32 accumulation as the kernel."""
    f32 = lambda x: x.astype(jnp.float32)
    bf16 = lambda x: x.astype(jnp.bfloat16)
    ts = f32(bf16(transformer_state))
    st = f32(bf16(static_features))
    s = jnp.maximum(bf16(st @ f32(p["w_static"]) + p["b_static"]), 0.0)
    h1 = jnp.maximum(
        bf16(ts @ f32(p["w1_t"]) + f32(s) @ f32(p["w1_s"]) + p["b1"]), 0.0)
    h2 = jnp.maximum(bf16(f32(h1) @ f32(p["w2"]) + p["b2"]), 0.0)
    return f32(h2) @ f32(p["w_out"]) + p["b_out"]


if __name__ == "__main__":
    key = jax.random.PRNGKey(0)
    k_params, k_ts, k_st = jax.random.split(key, 3)

    B = 2
    params = init_params(k_params)
    transformer_state = jax.random.normal(k_ts, (B, TRANSFORMER_EMBED_DIM), jnp.float32)
    static_features = jax.random.normal(k_st, (B, STATIC_INPUT_DIM), jnp.float32)

    q_values = dqn_agent_forward(transformer_state, static_features, params)
    q_values = jax.block_until_ready(q_values)

    q_ref = reference_forward(transformer_state, static_features, params)
    assert q_values.shape == (B, NUM_CLASSES)
    assert jnp.allclose(q_values, q_ref.astype(jnp.float32), atol=1e-3, rtol=1e-3)

    print("KERNEL_OK")
</pallas_src>

<mosaic_0001>
module attributes {stable_mosaic.version = 11 : i64} {
  func.func @_dqn_kernel(%arg0: i32, %arg1: memref<2x64xf32, #tpu.memory_space<vmem>>, %arg2: memref<2x16xf32, #tpu.memory_space<vmem>>, %arg3: memref<16x32xbf16, #tpu.memory_space<vmem>>, %arg4: memref<1x32xf32, #tpu.memory_space<vmem>>, %arg5: memref<64x64xbf16, #tpu.memory_space<vmem>>, %arg6: memref<32x64xbf16, #tpu.memory_space<vmem>>, %arg7: memref<1x64xf32, #tpu.memory_space<vmem>>, %arg8: memref<64x32xbf16, #tpu.memory_space<vmem>>, %arg9: memref<1x32xf32, #tpu.memory_space<vmem>>, %arg10: memref<32x8xbf16, #tpu.memory_space<vmem>>, %arg11: memref<1x8xf32, #tpu.memory_space<vmem>>, %arg12: memref<2x8xf32, #tpu.memory_space<vmem>>) attributes {dimension_semantics = [#tpu.dimension_semantics<parallel>], iteration_bounds = array<i64: 1>, scalar_prefetch = 0 : i64, scratch_operands = 0 : i64, tpu.core_type = #tpu.core_type<tc>, window_params = [{transform_indices = @transform_0, window_bounds = array<i64: 2, 64>}, {transform_indices = @transform_1, window_bounds = array<i64: 2, 16>}, {pipeline_mode = #tpu.pipeline_mode<synchronous>, transform_indices = @transform_2, window_bounds = array<i64: 16, 32>}, {pipeline_mode = #tpu.pipeline_mode<synchronous>, transform_indices = @transform_3, window_bounds = array<i64: 1, 32>}, {pipeline_mode = #tpu.pipeline_mode<synchronous>, transform_indices = @transform_4, window_bounds = array<i64: 64, 64>}, {pipeline_mode = #tpu.pipeline_mode<synchronous>, transform_indices = @transform_5, window_bounds = array<i64: 32, 64>}, {pipeline_mode = #tpu.pipeline_mode<synchronous>, transform_indices = @transform_6, window_bounds = array<i64: 1, 64>}, {pipeline_mode = #tpu.pipeline_mode<synchronous>, transform_indices = @transform_7, window_bounds = array<i64: 64, 32>}, {pipeline_mode = #tpu.pipeline_mode<synchronous>, transform_indices = @transform_8, window_bounds = array<i64: 1, 32>}, {pipeline_mode = #tpu.pipeline_mode<synchronous>, transform_indices = @transform_9, window_bounds = array<i64: 32, 8>}, {pipeline_mode = #tpu.pipeline_mode<synchronous>, transform_indices = @transform_10, window_bounds = array<i64: 1, 8>}, {transform_indices = @transform_11, window_bounds = array<i64: 2, 8>}]} {
    %c0 = arith.constant 0 : index
    %c0_0 = arith.constant 0 : index
    %0 = vector.load %arg1[%c0, %c0_0] : memref<2x64xf32, #tpu.memory_space<vmem>>, vector<2x64xf32>
    %1 = arith.truncf %0 : vector<2x64xf32> to vector<2x64xbf16>
    %c0_1 = arith.constant 0 : index
    %c0_2 = arith.constant 0 : index
    %2 = vector.load %arg2[%c0_1, %c0_2] : memref<2x16xf32, #tpu.memory_space<vmem>>, vector<2x16xf32>
    %3 = arith.truncf %2 : vector<2x16xf32> to vector<2x16xbf16>
    %c0_3 = arith.constant 0 : index
    %c0_4 = arith.constant 0 : index
    %4 = vector.load %arg3[%c0_3, %c0_4] : memref<16x32xbf16, #tpu.memory_space<vmem>>, vector<16x32xbf16>
    %cst = arith.constant dense<0.000000e+00> : vector<2x32xf32>
    %5 = tpu.matmul %3, %4, %cst {dimension_numbers = #tpu.dot_dimension_numbers<[1], [0], [0], [1], [0, 0, 1, 1], [], []>} : vector<2x16xbf16>, vector<16x32xbf16>, vector<2x32xf32> -> vector<2x32xf32>
    %c0_5 = arith.constant 0 : index
    %c0_6 = arith.constant 0 : index
    %6 = vector.load %arg4[%c0_5, %c0_6] : memref<1x32xf32, #tpu.memory_space<vmem>>, vector<1x32xf32>
    %7 = vector.broadcast %6 : vector<1x32xf32> to vector<2x32xf32>
    %8 = arith.addf %5, %7 : vector<2x32xf32>
    %9 = arith.truncf %8 : vector<2x32xf32> to vector<2x32xbf16>
    %cst_7 = arith.constant 0.000000e+00 : bf16
    %10 = vector.broadcast %cst_7 : bf16 to vector<2x32xbf16>
    %11 = arith.maximumf %9, %10 : vector<2x32xbf16>
    %c0_8 = arith.constant 0 : index
    %c0_9 = arith.constant 0 : index
    %12 = vector.load %arg5[%c0_8, %c0_9] : memref<64x64xbf16, #tpu.memory_space<vmem>>, vector<64x64xbf16>
    %cst_10 = arith.constant dense<0.000000e+00> : vector<2x64xf32>
    %13 = tpu.matmul %1, %12, %cst_10 {dimension_numbers = #tpu.dot_dimension_numbers<[1], [0], [0], [1], [0, 0, 1, 1], [], []>} : vector<2x64xbf16>, vector<64x64xbf16>, vector<2x64xf32> -> vector<2x64xf32>
    %c0_11 = arith.constant 0 : index
    %c0_12 = arith.constant 0 : index
    %14 = vector.load %arg6[%c0_11, %c0_12] : memref<32x64xbf16, #tpu.memory_space<vmem>>, vector<32x64xbf16>
    %cst_13 = arith.constant dense<0.000000e+00> : vector<2x64xf32>
    %15 = tpu.matmul %11, %14, %cst_13 {dimension_numbers = #tpu.dot_dimension_numbers<[1], [0], [0], [1], [0, 0, 1, 1], [], []>} : vector<2x32xbf16>, vector<32x64xbf16>, vector<2x64xf32> -> vector<2x64xf32>
    %16 = arith.addf %13, %15 : vector<2x64xf32>
    %c0_14 = arith.constant 0 : index
    %c0_15 = arith.constant 0 : index
    %17 = vector.load %arg7[%c0_14, %c0_15] : memref<1x64xf32, #tpu.memory_space<vmem>>, vector<1x64xf32>
    %18 = vector.broadcast %17 : vector<1x64xf32> to vector<2x64xf32>
    %19 = arith.addf %16, %18 : vector<2x64xf32>
    %20 = arith.truncf %19 : vector<2x64xf32> to vector<2x64xbf16>
    %cst_16 = arith.constant 0.000000e+00 : bf16
    %21 = vector.broadcast %cst_16 : bf16 to vector<2x64xbf16>
    %22 = arith.maximumf %20, %21 : vector<2x64xbf16>
    %c0_17 = arith.constant 0 : index
    %c0_18 = arith.constant 0 : index
    %23 = vector.load %arg8[%c0_17, %c0_18] : memref<64x32xbf16, #tpu.memory_space<vmem>>, vector<64x32xbf16>
    %cst_19 = arith.constant dense<0.000000e+00> : vector<2x32xf32>
    %24 = tpu.matmul %22, %23, %cst_19 {dimension_numbers = #tpu.dot_dimension_numbers<[1], [0], [0], [1], [0, 0, 1, 1], [], []>} : vector<2x64xbf16>, vector<64x32xbf16>, vector<2x32xf32> -> vector<2x32xf32>
    %c0_20 = arith.constant 0 : index
    %c0_21 = arith.constant 0 : index
    %25 = vector.load %arg9[%c0_20, %c0_21] : memref<1x32xf32, #tpu.memory_space<vmem>>, vector<1x32xf32>
    %26 = vector.broadcast %25 : vector<1x32xf32> to vector<2x32xf32>
    %27 = arith.addf %24, %26 : vector<2x32xf32>
    %28 = arith.truncf %27 : vector<2x32xf32> to vector<2x32xbf16>
    %cst_22 = arith.constant 0.000000e+00 : bf16
    %29 = vector.broadcast %cst_22 : bf16 to vector<2x32xbf16>
    %30 = arith.maximumf %28, %29 : vector<2x32xbf16>
    %c0_23 = arith.constant 0 : index
    %c0_24 = arith.constant 0 : index
    %31 = vector.load %arg10[%c0_23, %c0_24] : memref<32x8xbf16, #tpu.memory_space<vmem>>, vector<32x8xbf16>
    %cst_25 = arith.constant dense<0.000000e+00> : vector<2x8xf32>
    %32 = tpu.matmul %30, %31, %cst_25 {dimension_numbers = #tpu.dot_dimension_numbers<[1], [0], [0], [1], [0, 0, 1, 1], [], []>} : vector<2x32xbf16>, vector<32x8xbf16>, vector<2x8xf32> -> vector<2x8xf32>
    %c0_26 = arith.constant 0 : index
    %c0_27 = arith.constant 0 : index
    %33 = vector.load %arg11[%c0_26, %c0_27] : memref<1x8xf32, #tpu.memory_space<vmem>>, vector<1x8xf32>
    %34 = vector.broadcast %33 : vector<1x8xf32> to vector<2x8xf32>
    %35 = arith.addf %32, %34 : vector<2x8xf32>
    %c0_28 = arith.constant 0 : index
    %c0_29 = arith.constant 0 : index
    %36 = vector.load %arg12[%c0_28, %c0_29] : memref<2x8xf32, #tpu.memory_space<vmem>>, vector<2x8xf32>
    tpu.vector_store %arg12[%c0_28, %c0_29], %35 {strides = array<i32>} : memref<2x8xf32, #tpu.memory_space<vmem>>, vector<2x8xf32>,
    return
  }
  func.func @transform_0(%arg0: i32) -> (i32, i32) {
    %c0_i32 = arith.constant 0 : i32
    %c0_i32_0 = arith.constant 0 : i32
    return %arg0, %c0_i32 : i32, i32
  }
  func.func @transform_1(%arg0: i32) -> (i32, i32) {
    %c0_i32 = arith.constant 0 : i32
    %c0_i32_0 = arith.constant 0 : i32
    return %arg0, %c0_i32 : i32, i32
  }
  func.func @transform_2(%arg0: i32) -> (i32, i32) {
    %c0_i32 = arith.constant 0 : i32
    %c0_i32_0 = arith.constant 0 : i32
    %c0_i32_1 = arith.constant 0 : i32
    return %c0_i32, %c0_i32_0 : i32, i32
  }
  func.func @transform_3(%arg0: i32) -> (i32, i32) {
    %c0_i32 = arith.constant 0 : i32
    %c0_i32_0 = arith.constant 0 : i32
    %c0_i32_1 = arith.constant 0 : i32
    return %c0_i32, %c0_i32_0 : i32, i32
  }
  func.func @transform_4(%arg0: i32) -> (i32, i32) {
    %c0_i32 = arith.constant 0 : i32
    %c0_i32_0 = arith.constant 0 : i32
    %c0_i32_1 = arith.constant 0 : i32
    return %c0_i32, %c0_i32_0 : i32, i32
  }
  func.func @transform_5(%arg0: i32) -> (i32, i32) {
    %c0_i32 = arith.constant 0 : i32
    %c0_i32_0 = arith.constant 0 : i32
    %c0_i32_1 = arith.constant 0 : i32
    return %c0_i32, %c0_i32_0 : i32, i32
  }
  func.func @transform_6(%arg0: i32) -> (i32, i32) {
    %c0_i32 = arith.constant 0 : i32
    %c0_i32_0 = arith.constant 0 : i32
    %c0_i32_1 = arith.constant 0 : i32
    return %c0_i32, %c0_i32_0 : i32, i32
  }
  func.func @transform_7(%arg0: i32) -> (i32, i32) {
    %c0_i32 = arith.constant 0 : i32
    %c0_i32_0 = arith.constant 0 : i32
    %c0_i32_1 = arith.constant 0 : i32
    return %c0_i32, %c0_i32_0 : i32, i32
  }
  func.func @transform_8(%arg0: i32) -> (i32, i32) {
    %c0_i32 = arith.constant 0 : i32
    %c0_i32_0 = arith.constant 0 : i32
    %c0_i32_1 = arith.constant 0 : i32
    return %c0_i32, %c0_i32_0 : i32, i32
  }
  func.func @transform_9(%arg0: i32) -> (i32, i32) {
    %c0_i32 = arith.constant 0 : i32
    %c0_i32_0 = arith.constant 0 : i32
    %c0_i32_1 = arith.constant 0 : i32
    return %c0_i32, %c0_i32_0 : i32, i32
  }
  func.func @transform_10(%arg0: i32) -> (i32, i32) {
    %c0_i32 = arith.constant 0 : i32
    %c0_i32_0 = arith.constant 0 : i32
    %c0_i32_1 = arith.constant 0 : i32
    return %c0_i32, %c0_i32_0 : i32, i32
  }
  func.func @transform_11(%arg0: i32) -> (i32, i32) {
    %c0_i32 = arith.constant 0 : i32
    %c0_i32_0 = arith.constant 0 : i32
    return %arg0, %c0_i32 : i32, i32
  }
}

</mosaic_0001>

<llo_original>
// kernel: tpu_custom_call.1
$region0: #{tpu_custom_call.1}
  #allocation0 [shape = 'u32[]', space=smem, size = 0x4, offset = 0x4, fixed_abs, tag = 'smem constant byte address 0x4 - core index']
  #allocation1 [shape = 'u32[144,128]{1,0:T(1,128)}', space=vmem, size = 0x12000, scoped, tag = 'internal scratch']
  %s0 = inlined_call_operand.vmem [shape: f32[2,64], index: 0, kind: input, shape index: {}]
  %s1 = inlined_call_operand.vmem [shape: f32[2,16], index: 1, kind: input, shape index: {}]
  %s2 = inlined_call_operand.vmem [shape: bf16[16,32], index: 2, kind: input, shape index: {}]
  %s3 = inlined_call_operand.vmem [shape: f32[1,32], index: 3, kind: input, shape index: {}]
  %s4 = inlined_call_operand.vmem [shape: bf16[64,64], index: 4, kind: input, shape index: {}]
  %s5 = inlined_call_operand.vmem [shape: bf16[32,64], index: 5, kind: input, shape index: {}]
  %s6 = inlined_call_operand.vmem [shape: f32[1,64], index: 6, kind: input, shape index: {}]
  %s7 = inlined_call_operand.vmem [shape: bf16[64,32], index: 7, kind: input, shape index: {}]
  %s8 = inlined_call_operand.hbm [shape: f32[1,32], index: 8, kind: input, shape index: {}]
  %s9 = inlined_call_operand.vmem [shape: bf16[32,8], index: 9, kind: input, shape index: {}]
  %s10 = inlined_call_operand.vmem [shape: f32[1,8], index: 10, kind: input, shape index: {}]
  %s11 = inlined_call_operand.hbm [shape: f32[2,8], index: 11, kind: output, shape index: {}]
  %s12 = sld [smem:[#allocation0]]
  $region58: #{tpu_custom_call.1} parent=0
    _
  %s14 = ssub.s32 1, %s12
  %s15 = scalar_select 0, %s14, %s12
  $region1: #{tpu_custom_call.1} parent=0
    #allocation2 [shape = 'u8[512]{0}', space=vmem, size = 0x400, scoped, tag = 'input window, operand 8, single buffered']
    #allocation3 [shape = 's32[1]{0}', space=sflag, size = 0x4, scoped, tag = 'scoped memory for tpu_custom_call.1']
    #allocation4 [shape = 's32[1]{0}', space=sflag, size = 0x4, scoped, tag = 'scoped memory for tpu_custom_call.1']
    #allocation5 [shape = 'u8[1024]{0}', space=vmem, size = 0x400, scoped, tag = 'output window, operand 0, single buffered']
    %16 = vsyncpa [#allocation3], 0
    %17 = vsyncpa [#allocation4], 0
    // Predicated region
    $region2: #{tpu_custom_call.1} parent=1 // pred_check
      _
    $region3: #{tpu_custom_call.1} parent=1 // pred_check_branch
      %19 = sbr.rel (0) target = $region5
    $region4: #{tpu_custom_call.1} parent=1 // pred_region
      _
    $region5: #{tpu_custom_call.1} parent=1 // pred_fallthru
      _
    // Predicated region
    $region6: #{tpu_custom_call.1} parent=1 // pred_check
      _
    $region7: #{tpu_custom_call.1} parent=1 // pred_check_branch
      %21 = sbr.rel (0) target = $region9
    $region8: #{tpu_custom_call.1} parent=1 // pred_region
      _
    $region9: #{tpu_custom_call.1} parent=1 // pred_fallthru
      _
    // Predicated region
    $region10: #{tpu_custom_call.1} parent=1 // pred_check
      _
    $region11: #{tpu_custom_call.1} parent=1 // pred_check_branch
      %23 = sbr.rel (0) target = $region13
    $region12: #{tpu_custom_call.1} parent=1 // pred_region
      _
    $region13: #{tpu_custom_call.1} parent=1 // pred_fallthru
      _
    // Predicated region
    $region14: #{tpu_custom_call.1} parent=1 // pred_check
      _
    $region15: #{tpu_custom_call.1} parent=1 // pred_check_branch
      %25 = sbr.rel (0) target = $region17
    $region16: #{tpu_custom_call.1} parent=1 // pred_region
      _
    $region17: #{tpu_custom_call.1} parent=1 // pred_fallthru
      _
    // Predicated region
    $region18: #{tpu_custom_call.1} parent=1 // pred_check
      _
    $region19: #{tpu_custom_call.1} parent=1 // pred_check_branch
      %27 = sbr.rel (0) target = $region21
    $region20: #{tpu_custom_call.1} parent=1 // pred_region
      _
    $region21: #{tpu_custom_call.1} parent=1 // pred_fallthru
      _
    // Predicated region
    $region22: #{tpu_custom_call.1} parent=1 // pred_check
      _
    $region23: #{tpu_custom_call.1} parent=1 // pred_check_branch
      %29 = sbr.rel (0) target = $region25
    $region24: #{tpu_custom_call.1} parent=1 // pred_region
      _
    $region25: #{tpu_custom_call.1} parent=1 // pred_fallthru
      _
    // Predicated region
    $region26: #{tpu_custom_call.1} parent=1 // pred_check
      _
    $region27: #{tpu_custom_call.1} parent=1 // pred_check_branch
      %31 = sbr.rel (0) target = $region29
    $region28: #{tpu_custom_call.1} parent=1 // pred_region
      _
    $region29: #{tpu_custom_call.1} parent=1 // pred_fallthru
      _
    // Predicated region
    $region30: #{tpu_custom_call.1} parent=1 // pred_check
      _
    $region31: #{tpu_custom_call.1} parent=1 // pred_check_branch
      %33 = sbr.rel (0) target = $region33
    $region32: #{tpu_custom_call.1} parent=1 // pred_region
      _
    $region33: #{tpu_custom_call.1} parent=1 // pred_fallthru
      _
    // Predicated region
    $region34: #{tpu_custom_call.1} parent=1 // pred_check
      _
    $region35: #{tpu_custom_call.1} parent=1 // pred_check_branch
      %35 = sbr.rel (0) target = $region37
    $region36: #{tpu_custom_call.1} parent=1 // pred_region
      %s37 = ssub.s32 16, 16
      %38 = vsyncadd [#allocation3], %s37
      %s40 = sshll.u32 [#allocation2], 4
      %s41 = int_to_ptr.vmem [resolvable:$true] %s40
      %43 = dma.hbm_to_vmem [thread:$0]  %s8, 16, %s41, [#allocation3]
    $region37: #{tpu_custom_call.1} parent=1 // pred_fallthru
      _
    // Predicated region
    $region38: #{tpu_custom_call.1} parent=1 // pred_check
      _
    $region39: #{tpu_custom_call.1} parent=1 // pred_check_branch
      %45 = sbr.rel (0) target = $region41
    $region40: #{tpu_custom_call.1} parent=1 // pred_region
      _
    $region41: #{tpu_custom_call.1} parent=1 // pred_fallthru
      _
    // Predicated region
    $region42: #{tpu_custom_call.1} parent=1 // pred_check
      _
    $region43: #{tpu_custom_call.1} parent=1 // pred_check_branch
      %47 = sbr.rel (0) target = $region45
    $region44: #{tpu_custom_call.1} parent=1 // pred_region
      _
    $region45: #{tpu_custom_call.1} parent=1 // pred_fallthru
      _
    // Predicated region
    $region46: #{tpu_custom_call.1} parent=1 // pred_check
      _
    $region47: #{tpu_custom_call.1} parent=1 // pred_check_branch
      %49 = sbr.rel (0) target = $region49
    $region48: #{tpu_custom_call.1} parent=1 // pred_region
      %50 = dma.done [#allocation3], 16
    $region49: #{tpu_custom_call.1} parent=1 // pred_fallthru
      _
    %v52 = vld [vmem:[%s0] sm:$0x3]
    %v53 = vpack.c.bf16 %v52, %v52
    %v54 = vld [vmem:[%s1] sm:$0x3]
    %v55 = vpack.c.bf16 %v54, %v54
    %v56 = vld [vmem:[%s2] sm:$0xf]
    %v57 = vld [vmem:[%s2 + $0x4] sm:$0xf]
    %v58 = vld [vmem:[%s3] sm:$0x1]
    %v60 = vlaneseq
    %v61 = vshrl.u32 %v60, 7
    %v62 = vsub.s32 0, %v61
    %v63 = vrot.slane %v58, %v62
    %v67 = vunpack.c.l.b16 %v56
    %v68 = vunpack.c.l.b16 %v57
    %v69 = vpack.c.b16 %v68, %v67
    %vm71 = vcmask 130048
    %v73 = vsel %vm71, %v55, 0
    %75 = vmatprep.subr.bf16.mxu0 0
    %76 = vmatpush1.bf16.msra.mxu0 0
    %77 = vmatprep.subr.bf16.mxu0 0
    %78 = vmatpush1.bf16.msra.mxu0 0
    %79 = vmatprep.subr.bf16.mxu0 0
    %80 = vmatpush1.bf16.msra.mxu0 0
    %81 = vmatprep.subr.bf16.mxu0 0
    %82 = vmatpush1.bf16.msra.mxu0 0
    %83 = vmatprep.subr.bf16.mxu0 0
    %84 = vmatpush1.bf16.msra.mxu0 0
    %85 = vmatprep.subr.bf16.mxu0 0
    %86 = vmatpush1.bf16.msra.mxu0 0
    %87 = vmatprep.subr.bf16.mxu0 0
    %88 = vmatpush1.bf16.msra.mxu0 0
    %89 = vmatprep.subr.bf16.mxu0 0
    %90 = vmatpush1.bf16.msra.mxu0 %v69
    %91 = vmatprep.subr.bf16.mxu0 0
    %92 = vmatpush2.bf16.msra.mxu0 0
    %93 = vmatprep.subr.bf16.mxu0 0
    %94 = vmatpush2.bf16.msra.mxu0 0
    %95 = vmatprep.subr.bf16.mxu0 0
    %96 = vmatpush2.bf16.msra.mxu0 0
    %97 = vmatprep.subr.bf16.mxu0 0
    %98 = vmatpush2.bf16.msra.mxu0 0
    %99 = vmatprep.subr.bf16.mxu0 0
    %100 = vmatpush2.bf16.msra.mxu0 0
    %101 = vmatprep.subr.bf16.mxu0 0
    %102 = vmatpush2.bf16.msra.mxu0 0
    %103 = vmatprep.subr.bf16.mxu0 0
    %104 = vmatpush2.bf16.msra.mxu0 0
    %105 = vmatprep.subr.bf16.mxu0 0
    %106 = vmatpush2.bf16.msra.mxu0 0
    %107 = vmatprep.mubr.bf16.mxu0 0
    %108 = vmatmul.mubr.bf16.gmra.mxu0 %v73
    %v109 = vpop.f32.mrf.mxu0
    %v110 = vadd.f32 %v63, %v109
    %v111 = vpop.f32.mrf.mxu0
    %v112 = vpop.f32.mrf.mxu0
    %v113 = vpop.f32.mrf.mxu0
    %114 = vdwg.mxu0
    %v115 = vpack.c.bf16 %v110, %v110
    %v116 = vmax.bf16 %v115, 0
    %v117 = vld [vmem:[%s4] sm:$0xf]
    %v118 = vld [vmem:[%s4 + $0x4] sm:$0xf]
    %v119 = vld [vmem:[%s4 + $0x8] sm:$0xf]
    %v120 = vld [vmem:[%s4 + $0xc] sm:$0xf]
    %v121 = vld [vmem:[%s4 + $0x10] sm:$0xf]
    %v122 = vld [vmem:[%s4 + $0x14] sm:$0xf]
    %v123 = vld [vmem:[%s4 + $0x18] sm:$0xf]
    %v124 = vld [vmem:[%s4 + $0x1c] sm:$0xf]
    %v125 = vld [vmem:[%s5] sm:$0xf]
    %v126 = vld [vmem:[%s5 + $0x4] sm:$0xf]
    %v127 = vld [vmem:[%s5 + $0x8] sm:$0xf]
    %v128 = vld [vmem:[%s5 + $0xc] sm:$0xf]
    %v133 = vunpack.c.l.b16 %v125
    %v134 = vunpack.c.l.b16 %v126
    %v135 = vunpack.c.l.b16 %v127
    %v136 = vunpack.c.l.b16 %v128
    %v137 = vpack.c.b16 %v134, %v133
    %v138 = vpack.c.b16 %v136, %v135
    %vm141 = vcmask 261120
    %v143 = vsel %vm141, %v116, 0
    %145 = vmatprep.subr.bf16.mxu0 0
    %146 = vmatpush1.bf16.msra.mxu0 0
    %147 = vmatprep.subr.bf16.mxu0 0
    %148 = vmatpush1.bf16.msra.mxu0 0
    %149 = vmatprep.subr.bf16.mxu0 0
    %150 = vmatpush1.bf16.msra.mxu0 0
    %151 = vmatprep.subr.bf16.mxu0 0
    %152 = vmatpush1.bf16.msra.mxu0 0
    %153 = vmatprep.subr.bf16.mxu0 0
    %154 = vmatpush1.bf16.msra.mxu0 0
    %155 = vmatprep.subr.bf16.mxu0 0
    %156 = vmatpush1.bf16.msra.mxu0 0
    %157 = vmatprep.subr.bf16.mxu0 0
    %158 = vmatpush1.bf16.msra.mxu0 %v138
    %159 = vmatprep.subr.bf16.mxu0 0
    %160 = vmatpush1.bf16.msra.mxu0 %v137
    %161 = vmatprep.subr.bf16.mxu0 0
    %162 = vmatpush2.bf16.msra.mxu0 0
    %163 = vmatprep.subr.bf16.mxu0 0
    %164 = vmatpush2.bf16.msra.mxu0 0
    %165 = vmatprep.subr.bf16.mxu0 0
    %166 = vmatpush2.bf16.msra.mxu0 0
    %167 = vmatprep.subr.bf16.mxu0 0
    %168 = vmatpush2.bf16.msra.mxu0 0
    %169 = vmatprep.subr.bf16.mxu0 0
    %170 = vmatpush2.bf16.msra.mxu0 0
    %171 = vmatprep.subr.bf16.mxu0 0
    %172 = vmatpush2.bf16.msra.mxu0 0
    %173 = vmatprep.subr.bf16.mxu0 0
    %174 = vmatpush2.bf16.msra.mxu0 0
    %175 = vmatprep.subr.bf16.mxu0 0
    %176 = vmatpush2.bf16.msra.mxu0 0
    %177 = vmatprep.mubr.bf16.mxu0 0
    %178 = vmatmul.mubr.bf16.gmra.mxu0 %v143
    %v179 = vpop.f32.mrf.mxu0
    %v180 = vadd.f32 0.0, %v179
    %v181 = vpop.f32.mrf.mxu0
    %v182 = vpop.f32.mrf.mxu0
    %v183 = vpop.f32.mrf.mxu0
    %184 = vdwg.mxu0
    %v193 = vunpack.c.l.b16 %v117
    %v194 = vunpack.c.l.b16 %v118
    %v195 = vunpack.c.l.b16 %v119
    %v196 = vunpack.c.l.b16 %v120
    %v197 = vunpack.c.l.b16 %v121
    %v198 = vunpack.c.l.b16 %v122
    %v199 = vunpack.c.l.b16 %v123
    %v200 = vunpack.c.l.b16 %v124
    %v201 = vpack.c.b16 %v194, %v193
    %v202 = vpack.c.b16 %v196, %v195
    %v203 = vpack.c.b16 %v198, %v197
    %v204 = vpack.c.b16 %v200, %v199
    %vm209 = vcmask 523264
    %v211 = vsel %vm209, %v53, 0
    %213 = vmatprep.subr.bf16.mxu0 0
    %214 = vmatpush1.bf16.msra.mxu0 0
    %215 = vmatprep.subr.bf16.mxu0 0
    %216 = vmatpush1.bf16.msra.mxu0 0
    %217 = vmatprep.subr.bf16.mxu0 0
    %218 = vmatpush1.bf16.msra.mxu0 0
    %219 = vmatprep.subr.bf16.mxu0 0
    %220 = vmatpush1.bf16.msra.mxu0 0
    %221 = vmatprep.subr.bf16.mxu0 0
    %222 = vmatpush1.bf16.msra.mxu0 %v204
    %223 = vmatprep.subr.bf16.mxu0 0
    %224 = vmatpush1.bf16.msra.mxu0 %v203
    %225 = vmatprep.subr.bf16.mxu0 0
    %226 = vmatpush1.bf16.msra.mxu0 %v202
    %227 = vmatprep.subr.bf16.mxu0 0
    %228 = vmatpush1.bf16.msra.mxu0 %v201
    %229 = vmatprep.subr.bf16.mxu0 0
    %230 = vmatpush2.bf16.msra.mxu0 0
    %231 = vmatprep.subr.bf16.mxu0 0
    %232 = vmatpush2.bf16.msra.mxu0 0
    %233 = vmatprep.subr.bf16.mxu0 0
    %234 = vmatpush2.bf16.msra.mxu0 0
    %235 = vmatprep.subr.bf16.mxu0 0
    %236 = vmatpush2.bf16.msra.mxu0 0
    %237 = vmatprep.subr.bf16.mxu0 0
    %238 = vmatpush2.bf16.msra.mxu0 0
    %239 = vmatprep.subr.bf16.mxu0 0
    %240 = vmatpush2.bf16.msra.mxu0 0
    %241 = vmatprep.subr.bf16.mxu0 0
    %242 = vmatpush2.bf16.msra.mxu0 0
    %243 = vmatprep.subr.bf16.mxu0 0
    %244 = vmatpush2.bf16.msra.mxu0 0
    %245 = vmatprep.mubr.bf16.mxu0 0
    %246 = vmatmul.mubr.bf16.gmra.mxu0 %v211
    %v247 = vpop.f32.mrf.mxu0
    %v248 = vadd.f32 %v180, %v247
    %v249 = vpop.f32.mrf.mxu0
    %v250 = vpop.f32.mrf.mxu0
    %v251 = vpop.f32.mrf.mxu0
    %252 = vdwg.mxu0
    %v253 = vld [vmem:[%s6] sm:$0x1]
    %v255 = vlaneseq
    %v256 = vshrl.u32 %v255, 7
    %v257 = vsub.s32 0, %v256
    %v258 = vrot.slane %v253, %v257
    %v260 = vadd.f32 %v248, %v258
    %v261 = vpack.c.bf16 %v260, %v260
    %v262 = vmax.bf16 %v261, 0
    %v263 = vld [vmem:[%s7] sm:$0xf]
    %v264 = vld [vmem:[%s7 + $0x4] sm:$0xf]
    %v265 = vld [vmem:[%s7 + $0x8] sm:$0xf]
    %v266 = vld [vmem:[%s7 + $0xc] sm:$0xf]
    %v267 = vld [vmem:[%s7 + $0x10] sm:$0xf]
    %v268 = vld [vmem:[%s7 + $0x14] sm:$0xf]
    %v269 = vld [vmem:[%s7 + $0x18] sm:$0xf]
    %v270 = vld [vmem:[%s7 + $0x1c] sm:$0xf]
    %v271 = vld [vmem:[#allocation2] sm:$0x1]
    %v273 = vlaneseq
    %v274 = vshrl.u32 %v273, 7
    %v275 = vsub.s32 0, %v274
    %v276 = vrot.slane %v271, %v275
    %v286 = vunpack.c.l.b16 %v263
    %v287 = vunpack.c.l.b16 %v264
    %v288 = vunpack.c.l.b16 %v265
    %v289 = vunpack.c.l.b16 %v266
    %v290 = vunpack.c.l.b16 %v267
    %v291 = vunpack.c.l.b16 %v268
    %v292 = vunpack.c.l.b16 %v269
    %v293 = vunpack.c.l.b16 %v270
    %v294 = vpack.c.b16 %v287, %v286
    %v295 = vpack.c.b16 %v289, %v288
    %v296 = vpack.c.b16 %v291, %v290
    %v297 = vpack.c.b16 %v293, %v292
    %v303 = vsel %vm209, %v262, 0
    %305 = vmatprep.subr.bf16.mxu0 0
    %306 = vmatpush1.bf16.msra.mxu0 0
    %307 = vmatprep.subr.bf16.mxu0 0
    %308 = vmatpush1.bf16.msra.mxu0 0
    %309 = vmatprep.subr.bf16.mxu0 0
    %310 = vmatpush1.bf16.msra.mxu0 0
    %311 = vmatprep.subr.bf16.mxu0 0
    %312 = vmatpush1.bf16.msra.mxu0 0
    %313 = vmatprep.subr.bf16.mxu0 0
    %314 = vmatpush1.bf16.msra.mxu0 %v297
    %315 = vmatprep.subr.bf16.mxu0 0
    %316 = vmatpush1.bf16.msra.mxu0 %v296
    %317 = vmatprep.subr.bf16.mxu0 0
    %318 = vmatpush1.bf16.msra.mxu0 %v295
    %319 = vmatprep.subr.bf16.mxu0 0
    %320 = vmatpush1.bf16.msra.mxu0 %v294
    %321 = vmatprep.subr.bf16.mxu0 0
    %322 = vmatpush2.bf16.msra.mxu0 0
    %323 = vmatprep.subr.bf16.mxu0 0
    %324 = vmatpush2.bf16.msra.mxu0 0
    %325 = vmatprep.subr.bf16.mxu0 0
    %326 = vmatpush2.bf16.msra.mxu0 0
    %327 = vmatprep.subr.bf16.mxu0 0
    %328 = vmatpush2.bf16.msra.mxu0 0
    %329 = vmatprep.subr.bf16.mxu0 0
    %330 = vmatpush2.bf16.msra.mxu0 0
    %331 = vmatprep.subr.bf16.mxu0 0
    %332 = vmatpush2.bf16.msra.mxu0 0
    %333 = vmatprep.subr.bf16.mxu0 0
    %334 = vmatpush2.bf16.msra.mxu0 0
    %335 = vmatprep.subr.bf16.mxu0 0
    %336 = vmatpush2.bf16.msra.mxu0 0
    %337 = vmatprep.mubr.bf16.mxu0 0
    %338 = vmatmul.mubr.bf16.gmra.mxu0 %v303
    %v339 = vpop.f32.mrf.mxu0
    %v340 = vadd.f32 %v276, %v339
    %v341 = vpop.f32.mrf.mxu0
    %v342 = vpop.f32.mrf.mxu0
    %v343 = vpop.f32.mrf.mxu0
    %344 = vdwg.mxu0
    %v345 = vpack.c.bf16 %v340, %v340
    %v346 = vmax.bf16 %v345, 0
    %v347 = vld [vmem:[%s9] sm:$0xf]
    %v348 = vld [vmem:[%s9 + $0x4] sm:$0xf]
    %v349 = vld [vmem:[%s9 + $0x8] sm:$0xf]
    %v350 = vld [vmem:[%s9 + $0xc] sm:$0xf]
    %v351 = vld [vmem:[%s10] sm:$0x1]
    %v353 = vlaneseq
    %v354 = vshrl.u32 %v353, 7
    %v355 = vsub.s32 0, %v354
    %v356 = vrot.slane %v351, %v355
    %v362 = vunpack.c.l.b16 %v347
    %v363 = vunpack.c.l.b16 %v348
    %v364 = vunpack.c.l.b16 %v349
    %v365 = vunpack.c.l.b16 %v350
    %v366 = vpack.c.b16 %v363, %v362
    %v367 = vpack.c.b16 %v365, %v364
    %v371 = vsel %vm141, %v346, 0
    %373 = vmatprep.subr.bf16.mxu0 0
    %374 = vmatpush1.bf16.msra.mxu0 0
    %375 = vmatprep.subr.bf16.mxu0 0
    %376 = vmatpush1.bf16.msra.mxu0 0
    %377 = vmatprep.subr.bf16.mxu0 0
    %378 = vmatpush1.bf16.msra.mxu0 0
    %379 = vmatprep.subr.bf16.mxu0 0
    %380 = vmatpush1.bf16.msra.mxu0 0
    %381 = vmatprep.subr.bf16.mxu0 0
    %382 = vmatpush1.bf16.msra.mxu0 0
    %383 = vmatprep.subr.bf16.mxu0 0
    %384 = vmatpush1.bf16.msra.mxu0 0
    %385 = vmatprep.subr.bf16.mxu0 0
    %386 = vmatpush1.bf16.msra.mxu0 %v367
    %387 = vmatprep.subr.bf16.mxu0 0
    %388 = vmatpush1.bf16.msra.mxu0 %v366
    %389 = vmatprep.subr.bf16.mxu0 0
    %390 = vmatpush2.bf16.msra.mxu0 0
    %391 = vmatprep.subr.bf16.mxu0 0
    %392 = vmatpush2.bf16.msra.mxu0 0
    %393 = vmatprep.subr.bf16.mxu0 0
    %394 = vmatpush2.bf16.msra.mxu0 0
    %395 = vmatprep.subr.bf16.mxu0 0
    %396 = vmatpush2.bf16.msra.mxu0 0
    %397 = vmatprep.subr.bf16.mxu0 0
    %398 = vmatpush2.bf16.msra.mxu0 0
    %399 = vmatprep.subr.bf16.mxu0 0
    %400 = vmatpush2.bf16.msra.mxu0 0
    %401 = vmatprep.subr.bf16.mxu0 0
    %402 = vmatpush2.bf16.msra.mxu0 0
    %403 = vmatprep.subr.bf16.mxu0 0
    %404 = vmatpush2.bf16.msra.mxu0 0
    %405 = vmatprep.mubr.bf16.mxu0 0
    %406 = vmatmul.mubr.bf16.gmra.mxu0 %v371
    %v407 = vpop.f32.mrf.mxu0
    %v408 = vadd.f32 %v356, %v407
    %v409 = vpop.f32.mrf.mxu0
    %v410 = vpop.f32.mrf.mxu0
    %v411 = vpop.f32.mrf.mxu0
    %412 = vdwg.mxu0
    %vm413 = vcmask 58368
    %414 = vst.msk [vmem:[#allocation5] sm:$0x3] %vm413, %v408
    // Predicated region
    $region50: #{tpu_custom_call.1} parent=1 // pred_check
      _
    $region51: #{tpu_custom_call.1} parent=1 // pred_check_branch
      %416 = sbr.rel (0) target = $region53
    $region52: #{tpu_custom_call.1} parent=1 // pred_region
      %s418 = ssub.s32 32, 32
      %419 = vsyncadd [#allocation4], %s418
      %s421 = sshll.u32 [#allocation5], 4
      %s422 = int_to_ptr.vmem [resolvable:$true] %s421
      %424 = dma.vmem_to_hbm [thread:$0]  %s422, 32, %s11, [#allocation4]
    $region53: #{tpu_custom_call.1} parent=1 // pred_fallthru
      _
    // Predicated region
    $region54: #{tpu_custom_call.1} parent=1 // pred_check
      _
    $region55: #{tpu_custom_call.1} parent=1 // pred_check_branch
      %426 = sbr.rel (0) target = $region57
    $region56: #{tpu_custom_call.1} parent=1 // pred_region
      %427 = dma.done [#allocation4], 32
    $region57: #{tpu_custom_call.1} parent=1 // pred_fallthru
      _
    %428 = vsyncpa [#allocation3], 1
    %429 = vsyncpa [#allocation4], 1

</llo_original>
